<compile_context>
chip_gen: v6e
topology: v6e:2x2x1
jax: 0.10.0
libtpu: 0.0.40
codegen_flags: <defaults>
</compile_context>

<pallas_src>
import math

import jax
import jax.numpy as jnp
from jax.experimental import pallas as pl
from jax.experimental.pallas import tpu as pltpu


def biattention(input_d, input_e, W_d, W_e, b, U, mask_d, mask_e,
                compute_dtype=None, batch_block=1):
    """BiAttention forward. Returns (B, L, Td, Te) float32 (matches PyTorch).

    compute_dtype: dtype of the MXU GEMM operands (e.g. jnp.bfloat16 on
      v6e/v7x; halves DMA bytes and doubles MXU throughput).  Accumulation is
      always f32.  NOTE: with bf16 the second-GEMM LHS is a downcast f32
      accumulator, so rounding compounds slightly; keep the default (f32) when
      bit-accuracy vs the f32 reference matters.
    batch_block: number of batch rows fused into the M dimension of the
      first/third GEMMs per grid step.  Keep grid extent (B // batch_block)
      >= 2 so v7x's two TensorCores both get work.
    """
    B, Td, Dd = input_d.shape
    _, Te, De = input_e.shape
    L = W_d.shape[0]
    bb = batch_block
    assert B % bb == 0, "batch must be divisible by batch_block"

    f32 = jnp.float32
    cdt = compute_dtype if compute_dtype is not None else input_d.dtype

    # ---- wrapper-side layout plumbing (cheap, one-time XLA ops) ----
    d_c = input_d.astype(cdt)                                        # (B, Td, Dd)
    eT_c = jnp.transpose(input_e, (0, 2, 1)).astype(cdt)             # (B, De, Te)
    # U_all[:, l*De + j] == U[l, :, j]  -> one wide GEMM covers every label.
    u_all = jnp.transpose(U, (1, 0, 2)).reshape(Dd, L * De).astype(cdt)
    # Wd_bcast[:, l*Te + t] == W_d[l, :] -> the out_d broadcast falls out of a GEMM.
    wd_bcast = jnp.repeat(jnp.transpose(W_d), Te, axis=1).astype(cdt)  # (Dd, L*Te)
    # W_e flattened row-major: adding it to every row of (d @ U_all) before the
    # block-diagonal second GEMM reproduces the out_e broadcast exactly.
    we_flat = W_e.reshape(1, L * De).astype(f32)                     # (1, L*De)
    b_row = jnp.repeat(b.reshape(L), Te).reshape(1, L * Te).astype(f32)
    # 0/1 block-diagonal mask selecting the per-label e^T block (resident).
    mbd = jnp.kron(jnp.eye(L, dtype=f32), jnp.ones((De, Te), f32)).astype(cdt)
    md = mask_d.reshape(B, Td, 1).astype(f32)                        # column layout
    me_t = jnp.tile(mask_e, (1, L)).reshape(B, 1, L * Te).astype(f32)  # tiled row

    # Production Te (multiple of 128): store straight into (B, L, Td, Te) with
    # aligned per-label stores and skip the wrapper transpose.  Tiny Te keeps
    # the lane-dense (Td, L*Te) slab so every vst stays unmasked.
    direct_out = (Te % 128 == 0)

    def kernel(wdb_ref, wef_ref, brow_ref, u_ref, mbd_ref, d_ref, eT_ref,
               md_ref, me_ref, o_ref):
        d_flat = d_ref[...].reshape(bb * Td, Dd)
        # GEMM 1: biaffine left product for all labels, W_e term folded in.
        tmp = jnp.dot(d_flat, u_ref[...], preferred_element_type=f32)
        tmp = (tmp + wef_ref[...]).astype(cdt)                       # (bb*Td, L*De)
        # GEMM 3: W_d linear term broadcast over Te, bias row folded in.
        dl = jnp.dot(d_flat, wdb_ref[...], preferred_element_type=f32)
        dl = dl + brow_ref[...]                                      # (bb*Td, L*Te)
        mbd_v = mbd_ref[...]
        for i in range(bb):                                          # static, small
            eT = eT_ref[i]                                           # (De, Te)
            # Block-diagonal copy of e^T (lane/sublane concats + one mask mul,
            # built once per batch row — not per label).
            row = jnp.concatenate([eT] * L, axis=1)                  # (De, L*Te)
            bd = jnp.concatenate([row] * L, axis=0) * mbd_v          # (L*De, L*Te)
            # GEMM 2: ONE matmul yields the whole lane-dense (Td, L*Te) slab.
            # TODO(synk): for large L with 128-aligned De/Te, switch to
            # per-label GEMMs (aligned slices) to avoid the factor-L MXU waste.
            bil = jnp.dot(tmp[i * Td:(i + 1) * Td], bd,
                          preferred_element_type=f32)                # (Td, L*Te)
            slab = (bil + dl[i * Td:(i + 1) * Td]) * md_ref[i] * me_ref[i]
            if direct_out:
                for l in range(L):                                   # aligned stores
                    o_ref[i, l] = slab[:, l * Te:(l + 1) * Te].astype(o_ref.dtype)
            else:
                o_ref[i] = slab.astype(o_ref.dtype)

    if direct_out:
        out_shape = jax.ShapeDtypeStruct((B, L, Td, Te), f32)
        out_spec = pl.BlockSpec((bb, L, Td, Te), lambda bi: (bi, 0, 0, 0))
    else:
        out_shape = jax.ShapeDtypeStruct((B, Td, L * Te), f32)
        out_spec = pl.BlockSpec((bb, Td, L * Te), lambda bi: (bi, 0, 0))

    flops = 2 * B * Td * (Dd * L * De + (L * De) * (L * Te) + Dd * L * Te)
    bytes_accessed = 4 * (d_c.size + eT_c.size + u_all.size + wd_bcast.size
                          + we_flat.size + b_row.size + mbd.size + md.size
                          + me_t.size + B * Td * L * Te)

    # TODO(synk): for production sequence lengths, add grid axes tiling Td/Te
    # (>=512-row lane-dense blocks) and single-buffer the resident weight
    # operands (pl.Buffered(1)) so everything fits v7x's 64 MiB VMEM.
    out = pl.pallas_call(
        kernel,
        out_shape=out_shape,
        grid_spec=pltpu.PrefetchScalarGridSpec(
            num_scalar_prefetch=0,
            grid=(B // bb,),
            in_specs=[
                pl.BlockSpec((Dd, L * Te), lambda bi: (0, 0)),        # Wd_bcast (resident)
                pl.BlockSpec((1, L * De), lambda bi: (0, 0)),         # W_e row  (resident)
                pl.BlockSpec((1, L * Te), lambda bi: (0, 0)),         # bias row (resident)
                pl.BlockSpec((Dd, L * De), lambda bi: (0, 0)),        # U_all    (resident)
                pl.BlockSpec((L * De, L * Te), lambda bi: (0, 0)),    # block-diag mask
                pl.BlockSpec((bb, Td, Dd), lambda bi: (bi, 0, 0)),    # input_d
                pl.BlockSpec((bb, De, Te), lambda bi: (bi, 0, 0)),    # input_e^T
                pl.BlockSpec((bb, Td, 1), lambda bi: (bi, 0, 0)),     # mask_d column
                pl.BlockSpec((bb, 1, L * Te), lambda bi: (bi, 0, 0)), # mask_e tiled row
            ],
            out_specs=out_spec,
        ),
        compiler_params=pltpu.CompilerParams(
            dimension_semantics=("parallel",),
            vmem_limit_bytes=32 * 1024 * 1024),
        cost_estimate=pl.CostEstimate(flops=flops, transcendentals=0,
                                      bytes_accessed=bytes_accessed),
    )(wd_bcast, we_flat, b_row, u_all, mbd, d_c, eT_c, md, me_t)

    if direct_out:
        return out
    # Tiny-Te path: (B, Td, L*Te) -> (B, Td, L, Te) -> (B, L, Td, Te)
    return out.reshape(B, Td, L, Te).transpose(0, 2, 1, 3)


def biattention_ref(input_d, input_e, W_d, W_e, b, U, mask_d, mask_e):
    # Pure-JAX reference mirroring the PyTorch forward.
    out_d = jnp.einsum('ld,btd->blt', W_d, input_d)[..., None]          # (B,L,Td,1)
    out_e = jnp.einsum('le,bte->blt', W_e, input_e)[:, :, None, :]      # (B,L,1,Te)
    tmp = jnp.einsum('btd,lde->blte', input_d, U)                       # (B,L,Td,De)
    bil = jnp.einsum('blte,bse->blts', tmp, input_e)                    # (B,L,Td,Te)
    out = bil + out_d + out_e + b[None]                                 # b: (L,1,1)
    out = out * mask_d[:, None, :, None] * mask_e[:, None, None, :]
    return out


def xavier_uniform(key, shape, fan_in, fan_out):
    bound = math.sqrt(6.0 / (fan_in + fan_out))
    return jax.random.uniform(key, shape, jnp.float32, -bound, bound)


if __name__ == "__main__":
    # Small shapes consistent with the module's forward; L*Te == 128 keeps the
    # output slab lane-dense, and B // batch_block == 2 keeps a parallel grid
    # axis of extent 2 for v7x megacore.
    B, Td, Te = 2, 32, 32
    Dd, De, L = 64, 64, 4

    key = jax.random.PRNGKey(0)
    k1, k2, k3, k4, k5, k6 = jax.random.split(key, 6)

    input_d = jax.random.normal(k1, (B, Td, Dd), jnp.float32)
    input_e = jax.random.normal(k2, (B, Te, De), jnp.float32)

    # Deterministic parameter init (xavier_uniform for W_e, W_d, U).
    W_e = xavier_uniform(k3, (L, De), De, L)
    W_d = xavier_uniform(k4, (L, Dd), Dd, L)
    # Module init is zero; use a small non-zero bias to exercise the bias path.
    b = 0.5 * jax.random.normal(k6, (L, 1, 1), jnp.float32)
    U = xavier_uniform(k5, (L, Dd, De), De, Dd)

    # Masks (1.0 = keep); slightly non-trivial deterministic pattern.
    mask_d = (jnp.arange(Td)[None, :] < jnp.array([[Td], [Td - 5]])).astype(jnp.float32)
    mask_e = (jnp.arange(Te)[None, :] < jnp.array([[Te - 3], [Te]])).astype(jnp.float32)

    out = biattention(input_d, input_e, W_d, W_e, b, U, mask_d, mask_e,
                      compute_dtype=None, batch_block=1)
    out = jax.block_until_ready(out)

    ref = biattention_ref(input_d, input_e, W_d, W_e, b, U, mask_d, mask_e)
    assert out.shape == (B, L, Td, Te)
    assert jnp.allclose(out, ref, atol=1e-3, rtol=1e-3), "mismatch vs reference"

    print("KERNEL_OK")
</pallas_src>

<mosaic_0001>
module attributes {stable_mosaic.version = 11 : i64} {
  func.func @kernel(%arg0: i32, %arg1: memref<64x128xf32, #tpu.memory_space<vmem>>, %arg2: memref<1x256xf32, #tpu.memory_space<vmem>>, %arg3: memref<1x128xf32, #tpu.memory_space<vmem>>, %arg4: memref<64x256xf32, #tpu.memory_space<vmem>>, %arg5: memref<256x128xf32, #tpu.memory_space<vmem>>, %arg6: memref<1x32x64xf32, #tpu.memory_space<vmem>>, %arg7: memref<1x64x32xf32, #tpu.memory_space<vmem>>, %arg8: memref<1x32x1xf32, #tpu.memory_space<vmem>>, %arg9: memref<1x1x128xf32, #tpu.memory_space<vmem>>, %arg10: memref<1x32x128xf32, #tpu.memory_space<vmem>>) attributes {dimension_semantics = [#tpu.dimension_semantics<parallel>], iteration_bounds = array<i64: 2>, scalar_prefetch = 0 : i64, scratch_operands = 0 : i64, tpu.core_type = #tpu.core_type<tc>, window_params = [{pipeline_mode = #tpu.pipeline_mode<synchronous>, transform_indices = @transform_0, window_bounds = array<i64: 64, 128>}, {pipeline_mode = #tpu.pipeline_mode<synchronous>, transform_indices = @transform_1, window_bounds = array<i64: 1, 256>}, {pipeline_mode = #tpu.pipeline_mode<synchronous>, transform_indices = @transform_2, window_bounds = array<i64: 1, 128>}, {pipeline_mode = #tpu.pipeline_mode<synchronous>, transform_indices = @transform_3, window_bounds = array<i64: 64, 256>}, {pipeline_mode = #tpu.pipeline_mode<synchronous>, transform_indices = @transform_4, window_bounds = array<i64: 256, 128>}, {transform_indices = @transform_5, window_bounds = array<i64: 1, 32, 64>}, {transform_indices = @transform_6, window_bounds = array<i64: 1, 64, 32>}, {transform_indices = @transform_7, window_bounds = array<i64: 1, 32, 1>}, {transform_indices = @transform_8, window_bounds = array<i64: 1, 1, 128>}, {transform_indices = @transform_9, window_bounds = array<i64: 1, 32, 128>}]} {
    %c0 = arith.constant 0 : index
    %c0_0 = arith.constant 0 : index
    %c0_1 = arith.constant 0 : index
    %0 = vector.load %arg6[%c0, %c0_0, %c0_1] : memref<1x32x64xf32, #tpu.memory_space<vmem>>, vector<1x32x64xf32>
    %1 = vector.shape_cast %0 : vector<1x32x64xf32> to vector<32x64xf32>
    %c0_2 = arith.constant 0 : index
    %c0_3 = arith.constant 0 : index
    %2 = vector.load %arg4[%c0_2, %c0_3] : memref<64x256xf32, #tpu.memory_space<vmem>>, vector<64x256xf32>
    %cst = arith.constant dense<0.000000e+00> : vector<32x256xf32>
    %3 = tpu.matmul %1, %2, %cst {dimension_numbers = #tpu.dot_dimension_numbers<[1], [0], [0], [1], [0, 0, 1, 1], [], []>} : vector<32x64xf32>, vector<64x256xf32>, vector<32x256xf32> -> vector<32x256xf32>
    %c0_4 = arith.constant 0 : index
    %c0_5 = arith.constant 0 : index
    %4 = vector.load %arg2[%c0_4, %c0_5] : memref<1x256xf32, #tpu.memory_space<vmem>>, vector<1x256xf32>
    %5 = vector.broadcast %4 : vector<1x256xf32> to vector<32x256xf32>
    %6 = arith.addf %3, %5 : vector<32x256xf32>
    %c0_6 = arith.constant 0 : index
    %c0_7 = arith.constant 0 : index
    %7 = vector.load %arg1[%c0_6, %c0_7] : memref<64x128xf32, #tpu.memory_space<vmem>>, vector<64x128xf32>
    %cst_8 = arith.constant dense<0.000000e+00> : vector<32x128xf32>
    %8 = tpu.matmul %1, %7, %cst_8 {dimension_numbers = #tpu.dot_dimension_numbers<[1], [0], [0], [1], [0, 0, 1, 1], [], []>} : vector<32x64xf32>, vector<64x128xf32>, vector<32x128xf32> -> vector<32x128xf32>
    %c0_9 = arith.constant 0 : index
    %c0_10 = arith.constant 0 : index
    %9 = vector.load %arg3[%c0_9, %c0_10] : memref<1x128xf32, #tpu.memory_space<vmem>>, vector<1x128xf32>
    %10 = vector.broadcast %9 : vector<1x128xf32> to vector<32x128xf32>
    %11 = arith.addf %8, %10 : vector<32x128xf32>
    %c0_11 = arith.constant 0 : index
    %c0_12 = arith.constant 0 : index
    %12 = vector.load %arg5[%c0_11, %c0_12] : memref<256x128xf32, #tpu.memory_space<vmem>>, vector<256x128xf32>
    %c0_13 = arith.constant 0 : index
    %c0_14 = arith.constant 0 : index
    %c0_15 = arith.constant 0 : index
    %13 = vector.load %arg7[%c0_13, %c0_14, %c0_15] : memref<1x64x32xf32, #tpu.memory_space<vmem>>, vector<1x64x32xf32>
    %14 = vector.shape_cast %13 : vector<1x64x32xf32> to vector<64x32xf32>
    %15 = tpu.concatenate %14, %14, %14, %14 in 1 : vector<64x32xf32>, vector<64x32xf32>, vector<64x32xf32>, vector<64x32xf32> -> vector<64x128xf32>
    %16 = tpu.concatenate %15, %15, %15, %15 in 0 : vector<64x128xf32>, vector<64x128xf32>, vector<64x128xf32>, vector<64x128xf32> -> vector<256x128xf32>
    %17 = arith.mulf %16, %12 : vector<256x128xf32>
    %cst_16 = arith.constant dense<0.000000e+00> : vector<32x128xf32>
    %18 = tpu.matmul %6, %17, %cst_16 {dimension_numbers = #tpu.dot_dimension_numbers<[1], [0], [0], [1], [0, 0, 1, 1], [], []>} : vector<32x256xf32>, vector<256x128xf32>, vector<32x128xf32> -> vector<32x128xf32>
    %19 = arith.addf %18, %11 : vector<32x128xf32>
    %c0_17 = arith.constant 0 : index
    %c0_18 = arith.constant 0 : index
    %c0_19 = arith.constant 0 : index
    %20 = vector.load %arg8[%c0_17, %c0_18, %c0_19] : memref<1x32x1xf32, #tpu.memory_space<vmem>>, vector<1x32x1xf32>
    %21 = vector.shape_cast %20 : vector<1x32x1xf32> to vector<32x1xf32>
    %22 = vector.broadcast %21 : vector<32x1xf32> to vector<32x128xf32>
    %23 = arith.mulf %19, %22 : vector<32x128xf32>
    %c0_20 = arith.constant 0 : index
    %c0_21 = arith.constant 0 : index
    %c0_22 = arith.constant 0 : index
    %24 = vector.load %arg9[%c0_20, %c0_21, %c0_22] : memref<1x1x128xf32, #tpu.memory_space<vmem>>, vector<1x1x128xf32>
    %25 = vector.shape_cast %24 : vector<1x1x128xf32> to vector<1x128xf32>
    %26 = vector.broadcast %25 : vector<1x128xf32> to vector<32x128xf32>
    %27 = arith.mulf %23, %26 : vector<32x128xf32>
    %c0_23 = arith.constant 0 : index
    %c0_24 = arith.constant 0 : index
    %c0_25 = arith.constant 0 : index
    %28 = vector.load %arg10[%c0_23, %c0_24, %c0_25] : memref<1x32x128xf32, #tpu.memory_space<vmem>>, vector<1x32x128xf32>
    %29 = vector.shape_cast %28 : vector<1x32x128xf32> to vector<32x128xf32>
    %30 = vector.shape_cast %27 : vector<32x128xf32> to vector<1x32x128xf32>
    tpu.vector_store %arg10[%c0_23, %c0_24, %c0_25], %30 {strides = array<i32>} : memref<1x32x128xf32, #tpu.memory_space<vmem>>, vector<1x32x128xf32>,
    return
  }
  func.func @transform_0(%arg0: i32) -> (i32, i32) {
    %c0_i32 = arith.constant 0 : i32
    %c0_i32_0 = arith.constant 0 : i32
    %c0_i32_1 = arith.constant 0 : i32
    return %c0_i32, %c0_i32_0 : i32, i32
  }
  func.func @transform_1(%arg0: i32) -> (i32, i32) {
    %c0_i32 = arith.constant 0 : i32
    %c0_i32_0 = arith.constant 0 : i32
    %c0_i32_1 = arith.constant 0 : i32
    return %c0_i32, %c0_i32_0 : i32, i32
  }
  func.func @transform_2(%arg0: i32) -> (i32, i32) {
    %c0_i32 = arith.constant 0 : i32
    %c0_i32_0 = arith.constant 0 : i32
    %c0_i32_1 = arith.constant 0 : i32
    return %c0_i32, %c0_i32_0 : i32, i32
  }
  func.func @transform_3(%arg0: i32) -> (i32, i32) {
    %c0_i32 = arith.constant 0 : i32
    %c0_i32_0 = arith.constant 0 : i32
    %c0_i32_1 = arith.constant 0 : i32
    return %c0_i32, %c0_i32_0 : i32, i32
  }
  func.func @transform_4(%arg0: i32) -> (i32, i32) {
    %c0_i32 = arith.constant 0 : i32
    %c0_i32_0 = arith.constant 0 : i32
    %c0_i32_1 = arith.constant 0 : i32
    return %c0_i32, %c0_i32_0 : i32, i32
  }
  func.func @transform_5(%arg0: i32) -> (i32, i32, i32) {
    %c0_i32 = arith.constant 0 : i32
    %c0_i32_0 = arith.constant 0 : i32
    %c0_i32_1 = arith.constant 0 : i32
    return %arg0, %c0_i32, %c0_i32_0 : i32, i32, i32
  }
  func.func @transform_6(%arg0: i32) -> (i32, i32, i32) {
    %c0_i32 = arith.constant 0 : i32
    %c0_i32_0 = arith.constant 0 : i32
    %c0_i32_1 = arith.constant 0 : i32
    return %arg0, %c0_i32, %c0_i32_0 : i32, i32, i32
  }
  func.func @transform_7(%arg0: i32) -> (i32, i32, i32) {
    %c0_i32 = arith.constant 0 : i32
    %c0_i32_0 = arith.constant 0 : i32
    %c0_i32_1 = arith.constant 0 : i32
    return %arg0, %c0_i32, %c0_i32_0 : i32, i32, i32
  }
  func.func @transform_8(%arg0: i32) -> (i32, i32, i32) {
    %c0_i32 = arith.constant 0 : i32
    %c0_i32_0 = arith.constant 0 : i32
    %c0_i32_1 = arith.constant 0 : i32
    return %arg0, %c0_i32, %c0_i32_0 : i32, i32, i32
  }
  func.func @transform_9(%arg0: i32) -> (i32, i32, i32) {
    %c0_i32 = arith.constant 0 : i32
    %c0_i32_0 = arith.constant 0 : i32
    %c0_i32_1 = arith.constant 0 : i32
    return %arg0, %c0_i32, %c0_i32_0 : i32, i32, i32
  }
}

</mosaic_0001>

<llo_original>
// kernel: tpu_custom_call.1
$region0: #{tpu_custom_call.1}
  #allocation0 [shape = 'u32[]', space=smem, size = 0x4, offset = 0x4, fixed_abs, tag = 'smem constant byte address 0x4 - core index']
  #allocation1 [shape = 'u32[144,128]{1,0:T(1,128)}', space=vmem, size = 0x12000, scoped, tag = 'internal scratch']
  %s0 = inlined_call_operand.hbm [shape: f32[64,128], index: 0, kind: input, shape index: {}]
  %s1 = inlined_call_operand.vmem [shape: f32[1,256], index: 1, kind: input, shape index: {}]
  %s2 = inlined_call_operand.vmem [shape: f32[1,128], index: 2, kind: input, shape index: {}]
  %s3 = inlined_call_operand.hbm [shape: f32[64,256], index: 3, kind: input, shape index: {}]
  %s4 = inlined_call_operand.vmem [shape: f32[256,128], index: 4, kind: input, shape index: {}]
  %s5 = inlined_call_operand.hbm [shape: f32[2,32,64], index: 5, kind: input, shape index: {}]
  %s6 = inlined_call_operand.vmem [shape: f32[2,64,32], index: 6, kind: input, shape index: {}]
  %s7 = inlined_call_operand.vmem [shape: f32[2,32,1], index: 7, kind: input, shape index: {}]
  %s8 = inlined_call_operand.vmem [shape: f32[2,1,128], index: 8, kind: input, shape index: {}]
  %s9 = inlined_call_operand.hbm [shape: f32[2,32,128], index: 9, kind: output, shape index: {}]
  %s10 = sld [smem:[#allocation0]]
  $region81: #{tpu_custom_call.1} parent=0
    _
  %s12 = ssub.s32 1, %s10
  %s13 = scalar_select 0, %s12, %s10
  $region1: #{tpu_custom_call.1} parent=0
    #allocation2 [shape = 'u8[32768]{0}', space=vmem, size = 0x8000, scoped, tag = 'input window, operand 0, single buffered']
    #allocation3 [shape = 's32[2]{0}', space=sflag, size = 0x8, scoped, tag = 'scoped memory for tpu_custom_call.1']
    #allocation4 [shape = 's32[2]{0}', space=sflag, size = 0x8, scoped, tag = 'scoped memory for tpu_custom_call.1']
    #allocation5 [shape = 'u8[65536]{0}', space=vmem, size = 0x10000, scoped, tag = 'input window, operand 3, single buffered']
    #allocation6 [shape = 's32[1]{0}', space=sflag, size = 0x4, scoped, tag = 'scoped memory for tpu_custom_call.1']
    #allocation7 [shape = 'u8[32768]{0}', space=vmem, size = 0x8000, scoped, tag = 'input window, operand 5']
    #allocation8 [shape = 'u8[32768]{0}', space=vmem, size = 0x8000, scoped, tag = 'output window, operand 0']
    %14 = vsyncpa [#allocation3], 0
    %15 = vsyncpa [#allocation6], 0
    %16 = vsyncpa [#allocation4], 0
    %s17 = scalar_lea.sflag [#allocation4], 1
    %18 = vsyncpa %s17, 0
    loop: start=0, step=1, limit=4
    $region2: #{tpu_custom_call.1} parent=1 // loop_pre_header
      _
    $region3: #{tpu_custom_call.1} parent=1 // loop_header
      %s20 = sphi 0, %s24
      %p21 = scmp.ge.s32.totalorder %s20, 4
      %s28 = sphi 0, %s28
      %s30 = sphi 0, %s28
      %s31 = sphi 0, %s30
      %s45 = sphi 0, %s31
      %s49 = sphi 0, %s49
      %s51 = sphi 0, %s49
      %s52 = sphi 0, %s51
      %s66 = sphi 0, %s52
      %s70 = sphi 0, %s70
      %s72 = sphi 0, %s70
      %s73 = sphi 0, %s72
      %s87 = sphi 0, %s73
      %s91 = sphi 0, %s91
      %s93 = sphi 0, %s91
      %s94 = sphi 0, %s93
      %s108 = sphi 0, %s94
      %s112 = sphi 0, %s112
      %s114 = sphi 0, %s112
      %s115 = sphi 0, %s114
      %s129 = sphi 0, %s115
      %s135 = sphi 0, %s137
      %s138 = sphi 0, %s135
      %s139 = sphi 0, %s138
      %s155 = sphi 0, %s139
      %s161 = sphi 0, %s163
      %s164 = sphi 0, %s161
      %s165 = sphi 0, %s164
      %s181 = sphi 0, %s165
      %s187 = sphi 0, %s189
      %s190 = sphi 0, %s187
      %s191 = sphi 0, %s190
      %s207 = sphi 0, %s191
      %s213 = sphi 0, %s215
      %s216 = sphi 0, %s213
      %s217 = sphi 0, %s216
      %s233 = sphi 0, %s217
      %s239 = sphi 0, %s241
      %s242 = sphi 0, %s239
      %s243 = sphi 0, %s242
      %s259 = sphi 0, %s243
    $region4: #{tpu_custom_call.1} parent=1 // loop_header_branch
      %23 = sbr.rel (%p21) target = $region8
    $region5: #{tpu_custom_call.1} parent=1 // loop_body
      %s25 = ssub.s32 %s20, 1
      %s26 = ssub.s32 %s20, 2
      %s27 = sadd.s32 %s20, 1
      %s29 = sadd.s32 %s28, 1
      %p32 = scmp.eq.s32.totalorder %s20, 1
      %p33 = scmp.ne.s32.totalorder %s28, %s30
      %p34 = scmp.eq.s32.totalorder %s20, 0
      %p35 = por %p33, %p34
      %p36 = scmp.ne.s32.totalorder %s28, %s30
      %p37 = scmp.eq.s32.totalorder %s25, 1
      %p38 = por %p36, %p37
      %p39 = scmp.ne.s32.totalorder %s30, %s31
      %p40 = scmp.eq.s32.totalorder %s25, 0
      %p41 = por %p39, %p40
      %p42 = scmp.ne.s32.totalorder %s30, %s31
      %p43 = scmp.eq.s32.totalorder %s26, 1
      %p44 = por %p42, %p43
      %p46 = scmp.ne.s32.totalorder %s31, %s45
      %p47 = scmp.eq.s32.totalorder %s26, 0
      %p48 = por %p46, %p47
      %s50 = sadd.s32 %s49, 1
      %p53 = scmp.eq.s32.totalorder %s20, 1
      %p54 = scmp.ne.s32.totalorder %s49, %s51
      %p55 = scmp.eq.s32.totalorder %s20, 0
      %p56 = por %p54, %p55
      %p57 = scmp.ne.s32.totalorder %s49, %s51
      %p58 = scmp.eq.s32.totalorder %s25, 1
      %p59 = por %p57, %p58
      %p60 = scmp.ne.s32.totalorder %s51, %s52
      %p61 = scmp.eq.s32.totalorder %s25, 0
      %p62 = por %p60, %p61
      %p63 = scmp.ne.s32.totalorder %s51, %s52
      %p64 = scmp.eq.s32.totalorder %s26, 1
      %p65 = por %p63, %p64
      %p67 = scmp.ne.s32.totalorder %s52, %s66
      %p68 = scmp.eq.s32.totalorder %s26, 0
      %p69 = por %p67, %p68
      %s71 = sadd.s32 %s70, 1
      %p74 = scmp.eq.s32.totalorder %s20, 1
      %p75 = scmp.ne.s32.totalorder %s70, %s72
      %p76 = scmp.eq.s32.totalorder %s20, 0
      %p77 = por %p75, %p76
      %p78 = scmp.ne.s32.totalorder %s70, %s72
      %p79 = scmp.eq.s32.totalorder %s25, 1
      %p80 = por %p78, %p79
      %p81 = scmp.ne.s32.totalorder %s72, %s73
      %p82 = scmp.eq.s32.totalorder %s25, 0
      %p83 = por %p81, %p82
      %p84 = scmp.ne.s32.totalorder %s72, %s73
      %p85 = scmp.eq.s32.totalorder %s26, 1
      %p86 = por %p84, %p85
      %p88 = scmp.ne.s32.totalorder %s73, %s87
      %p89 = scmp.eq.s32.totalorder %s26, 0
      %p90 = por %p88, %p89
      %s92 = sadd.s32 %s91, 1
      %p95 = scmp.eq.s32.totalorder %s20, 1
      %p96 = scmp.ne.s32.totalorder %s91, %s93
      %p97 = scmp.eq.s32.totalorder %s20, 0
      %p98 = por %p96, %p97
      %p99 = scmp.ne.s32.totalorder %s91, %s93
      %p100 = scmp.eq.s32.totalorder %s25, 1
      %p101 = por %p99, %p100
      %p102 = scmp.ne.s32.totalorder %s93, %s94
      %p103 = scmp.eq.s32.totalorder %s25, 0
      %p104 = por %p102, %p103
      %p105 = scmp.ne.s32.totalorder %s93, %s94
      %p106 = scmp.eq.s32.totalorder %s26, 1
      %p107 = por %p105, %p106
      %p109 = scmp.ne.s32.totalorder %s94, %s108
      %p110 = scmp.eq.s32.totalorder %s26, 0
      %p111 = por %p109, %p110
      %s113 = sadd.s32 %s112, 1
      %p116 = scmp.eq.s32.totalorder %s20, 1
      %p117 = scmp.ne.s32.totalorder %s112, %s114
      %p118 = scmp.eq.s32.totalorder %s20, 0
      %p119 = por %p117, %p118
      %p120 = scmp.ne.s32.totalorder %s112, %s114
      %p121 = scmp.eq.s32.totalorder %s25, 1
      %p122 = por %p120, %p121
      %p123 = scmp.ne.s32.totalorder %s114, %s115
      %p124 = scmp.eq.s32.totalorder %s25, 0
      %p125 = por %p123, %p124
      %p126 = scmp.ne.s32.totalorder %s114, %s115
      %p127 = scmp.eq.s32.totalorder %s26, 1
      %p128 = por %p126, %p127
      %p130 = scmp.ne.s32.totalorder %s115, %s129
      %p131 = scmp.eq.s32.totalorder %s26, 0
      %p132 = por %p130, %p131
      %s133 = ssub.s32 %s20, %s27
      %p134 = scmp.eq.s32.totalorder %s133, 0
      %s136 = sadd.s32 %s135, 1
      %s137 = scalar_select %p134, %s135, %s136
      %p140 = pneg %p134
      %p141 = scmp.eq.s32.totalorder %s20, 1
      %p142 = por %p140, %p141
      %p143 = scmp.ne.s32.totalorder %s135, %s138
      %p144 = scmp.eq.s32.totalorder %s20, 0
      %p145 = por %p143, %p144
      %p146 = scmp.ne.s32.totalorder %s135, %s138
      %p147 = scmp.eq.s32.totalorder %s25, 1
      %p148 = por %p146, %p147
      %p149 = scmp.ne.s32.totalorder %s138, %s139
      %p150 = scmp.eq.s32.totalorder %s25, 0
      %p151 = por %p149, %p150
      %p152 = scmp.ne.s32.totalorder %s138, %s139
      %p153 = scmp.eq.s32.totalorder %s26, 1
      %p154 = por %p152, %p153
      %p156 = scmp.ne.s32.totalorder %s139, %s155
      %p157 = scmp.eq.s32.totalorder %s26, 0
      %p158 = por %p156, %p157
      %s159 = ssub.s32 %s20, %s27
      %p160 = scmp.eq.s32.totalorder %s159, 0
      %s162 = sadd.s32 %s161, 1
      %s163 = scalar_select %p160, %s161, %s162
      %p166 = pneg %p160
      %p167 = scmp.eq.s32.totalorder %s20, 1
      %p168 = por %p166, %p167
      %p169 = scmp.ne.s32.totalorder %s161, %s164
      %p170 = scmp.eq.s32.totalorder %s20, 0
      %p171 = por %p169, %p170
      %p172 = scmp.ne.s32.totalorder %s161, %s164
      %p173 = scmp.eq.s32.totalorder %s25, 1
      %p174 = por %p172, %p173
      %p175 = scmp.ne.s32.totalorder %s164, %s165
      %p176 = scmp.eq.s32.totalorder %s25, 0
      %p177 = por %p175, %p176
      %p178 = scmp.ne.s32.totalorder %s164, %s165
      %p179 = scmp.eq.s32.totalorder %s26, 1
      %p180 = por %p178, %p179
      %p182 = scmp.ne.s32.totalorder %s165, %s181
      %p183 = scmp.eq.s32.totalorder %s26, 0
      %p184 = por %p182, %p183
      %s185 = ssub.s32 %s20, %s27
      %p186 = scmp.eq.s32.totalorder %s185, 0
      %s188 = sadd.s32 %s187, 1
      %s189 = scalar_select %p186, %s187, %s188
      %p192 = pneg %p186
      %p193 = scmp.eq.s32.totalorder %s20, 1
      %p194 = por %p192, %p193
      %p195 = scmp.ne.s32.totalorder %s187, %s190
      %p196 = scmp.eq.s32.totalorder %s20, 0
      %p197 = por %p195, %p196
      %p198 = scmp.ne.s32.totalorder %s187, %s190
      %p199 = scmp.eq.s32.totalorder %s25, 1
      %p200 = por %p198, %p199
      %p201 = scmp.ne.s32.totalorder %s190, %s191
      %p202 = scmp.eq.s32.totalorder %s25, 0
      %p203 = por %p201, %p202
      %p204 = scmp.ne.s32.totalorder %s190, %s191
      %p205 = scmp.eq.s32.totalorder %s26, 1
      %p206 = por %p204, %p205
      %p208 = scmp.ne.s32.totalorder %s191, %s207
      %p209 = scmp.eq.s32.totalorder %s26, 0
      %p210 = por %p208, %p209
      %s211 = ssub.s32 %s20, %s27
      %p212 = scmp.eq.s32.totalorder %s211, 0
      %s214 = sadd.s32 %s213, 1
      %s215 = scalar_select %p212, %s213, %s214
      %p218 = pneg %p212
      %p219 = scmp.eq.s32.totalorder %s20, 1
      %p220 = por %p218, %p219
      %p221 = scmp.ne.s32.totalorder %s213, %s216
      %p222 = scmp.eq.s32.totalorder %s20, 0
      %p223 = por %p221, %p222
      %p224 = scmp.ne.s32.totalorder %s213, %s216
      %p225 = scmp.eq.s32.totalorder %s25, 1
      %p226 = por %p224, %p225
      %p227 = scmp.ne.s32.totalorder %s216, %s217
      %p228 = scmp.eq.s32.totalorder %s25, 0
      %p229 = por %p227, %p228
      %p230 = scmp.ne.s32.totalorder %s216, %s217
      %p231 = scmp.eq.s32.totalorder %s26, 1
      %p232 = por %p230, %p231
      %p234 = scmp.ne.s32.totalorder %s217, %s233
      %p235 = scmp.eq.s32.totalorder %s26, 0
      %p236 = por %p234, %p235
      %s237 = ssub.s32 %s20, %s27
      %p238 = scmp.eq.s32.totalorder %s237, 0
      %s240 = sadd.s32 %s239, 1
      %s241 = scalar_select %p238, %s239, %s240
      %p244 = pneg %p238
      %p245 = scmp.eq.s32.totalorder %s20, 1
      %p246 = por %p244, %p245
      %p247 = scmp.ne.s32.totalorder %s239, %s242
      %p248 = scmp.eq.s32.totalorder %s20, 0
      %p249 = por %p247, %p248
      %p250 = scmp.ne.s32.totalorder %s239, %s242
      %p251 = scmp.eq.s32.totalorder %s25, 1
      %p252 = por %p250, %p251
      %p253 = scmp.ne.s32.totalorder %s242, %s243
      %p254 = scmp.eq.s32.totalorder %s25, 0
      %p255 = por %p253, %p254
      %p256 = scmp.ne.s32.totalorder %s242, %s243
      %p257 = scmp.eq.s32.totalorder %s26, 1
      %p258 = por %p256, %p257
      %p260 = scmp.ne.s32.totalorder %s243, %s259
      %p261 = scmp.eq.s32.totalorder %s26, 0
      %p262 = por %p260, %p261
      %p263 = scmp.le.s32.totalorder 1, %s20
      %p264 = scmp.lt.s32.totalorder %s20, 3
      %p265 = pnand %p263, %p264
      %p266 = pneg %p265
      // Predicated region
      $region9: #{tpu_custom_call.1} parent=5 // pred_check
        _
      $region10: #{tpu_custom_call.1} parent=5 // pred_check_branch
        %268 = sbr.rel (%p265) target = $region12
      $region11: #{tpu_custom_call.1} parent=5 // pred_region
        %s269 = ssub.s32 %s20, 1
        // Predicated region
        $region13: #{tpu_custom_call.1} parent=11 // pred_check
          %p270 = pneg %p41
        $region14: #{tpu_custom_call.1} parent=11 // pred_check_branch
          %272 = sbr.rel (%p270) target = $region16
        $region15: #{tpu_custom_call.1} parent=11 // pred_region
          %s274 = ssub.s32 1024, 1024
          %275 = vsyncadd [#allocation3], %s274
          %s276 = sshll.u32 [#allocation2], 4
          %s277 = int_to_ptr.vmem [resolvable:$true] %s276
          %282 = dma.hbm_to_vmem [thread:$0]  %s0, 1024, %s277, [#allocation3], 128, 128, 8
        $region16: #{tpu_custom_call.1} parent=11 // pred_fallthru
          _
        // Predicated region
        $region17: #{tpu_custom_call.1} parent=11 // pred_check
          %p283 = pneg %p62
        $region18: #{tpu_custom_call.1} parent=11 // pred_check_branch
          %285 = sbr.rel (%p283) target = $region20
        $region19: #{tpu_custom_call.1} parent=11 // pred_region
          _
        $region20: #{tpu_custom_call.1} parent=11 // pred_fallthru
          _
        // Predicated region
        $region21: #{tpu_custom_call.1} parent=11 // pred_check
          %p286 = pneg %p83
        $region22: #{tpu_custom_call.1} parent=11 // pred_check_branch
          %288 = sbr.rel (%p286) target = $region24
        $region23: #{tpu_custom_call.1} parent=11 // pred_region
          _
        $region24: #{tpu_custom_call.1} parent=11 // pred_fallthru
          _
        // Predicated region
        $region25: #{tpu_custom_call.1} parent=11 // pred_check
          %p289 = pneg %p104
        $region26: #{tpu_custom_call.1} parent=11 // pred_check_branch
          %291 = sbr.rel (%p289) target = $region28
        $region27: #{tpu_custom_call.1} parent=11 // pred_region
          %s293 = ssub.s32 2048, 2048
          %294 = vsyncadd [#allocation6], %s293
          %s295 = sshll.u32 [#allocation5], 4
          %s296 = int_to_ptr.vmem [resolvable:$true] %s295
          %301 = dma.hbm_to_vmem [thread:$0]  %s3, 2048, %s296, [#allocation6], 256, 256, 16
        $region28: #{tpu_custom_call.1} parent=11 // pred_fallthru
          _
        // Predicated region
        $region29: #{tpu_custom_call.1} parent=11 // pred_check
          %p302 = pneg %p125
        $region30: #{tpu_custom_call.1} parent=11 // pred_check_branch
          %304 = sbr.rel (%p302) target = $region32
        $region31: #{tpu_custom_call.1} parent=11 // pred_region
          _
        $region32: #{tpu_custom_call.1} parent=11 // pred_fallthru
          _
      $region12: #{tpu_custom_call.1} parent=5 // pred_fallthru
        _
      %p305 = scmp.lt.s32.totalorder %s20, 2
      // Predicated region
      $region33: #{tpu_custom_call.1} parent=5 // pred_check
        %p306 = pneg %p305
      $region34: #{tpu_custom_call.1} parent=5 // pred_check_branch
        %308 = sbr.rel (%p306) target = $region36
      $region35: #{tpu_custom_call.1} parent=5 // pred_region
        // Predicated region
        $region37: #{tpu_custom_call.1} parent=35 // pred_check
          %p309 = pneg %p145
        $region38: #{tpu_custom_call.1} parent=35 // pred_check_branch
          %311 = sbr.rel (%p309) target = $region40
        $region39: #{tpu_custom_call.1} parent=35 // pred_region
          %s312 = sand.u32 %s20, 1
          %s313 = scalar_lea.sflag [#allocation3], %s312
          %s314 = sand.u32 %s135, 1
          %s315 = smul.addr %s314, 32
          %s316 = scalar_lea.vmem [#allocation7], %s315
          %s318 = ssub.s32 512, 512
          %319 = vsyncadd %s313, %s318
          %s320 = smul.addr %s20, 4
          %s321 = smul.addr %s320, 128
          %s322 = scalar_lea.hbm %s5, %s321
          %s323 = sshll.u32 %s316, 4
          %s324 = int_to_ptr.vmem [resolvable:$true] %s323
          %329 = dma.hbm_to_vmem [thread:$0]  %s322, 512, %s324, %s313, 128, 128, 8
        $region40: #{tpu_custom_call.1} parent=35 // pred_fallthru
          _
        // Predicated region
        $region41: #{tpu_custom_call.1} parent=35 // pred_check
          %p330 = pneg %p171
        $region42: #{tpu_custom_call.1} parent=35 // pred_check_branch
          %332 = sbr.rel (%p330) target = $region44
        $region43: #{tpu_custom_call.1} parent=35 // pred_region
          %p333 = scmp.lt.s32.totalorder %s20, 1
          %s334 = scalar_select %p333, %s20, 1
          %s335 = smul.addr %s334, 8
          %s336 = smul.addr %s335, 8
          %s337 = scalar_lea.vmem %s6, %s336
        $region44: #{tpu_custom_call.1} parent=35 // pred_fallthru
          _
        // Predicated region
        $region45: #{tpu_custom_call.1} parent=35 // pred_check
          %p338 = pneg %p197
        $region46: #{tpu_custom_call.1} parent=35 // pred_check_branch
          %340 = sbr.rel (%p338) target = $region48
        $region47: #{tpu_custom_call.1} parent=35 // pred_region
          %p341 = scmp.lt.s32.totalorder %s20, 1
          %s342 = scalar_select %p341, %s20, 1
          %s343 = smul.addr %s342, 4
          %s344 = smul.addr %s343, 8
          %s345 = scalar_lea.vmem %s7, %s344
        $region48: #{tpu_custom_call.1} parent=35 // pred_fallthru
          _
        // Predicated region
        $region49: #{tpu_custom_call.1} parent=35 // pred_check
          %p346 = pneg %p223
        $region50: #{tpu_custom_call.1} parent=35 // pred_check_branch
          %348 = sbr.rel (%p346) target = $region52
        $region51: #{tpu_custom_call.1} parent=35 // pred_region
          %p349 = scmp.lt.s32.totalorder %s20, 1
          %s350 = scalar_select %p349, %s20, 1
          %s351 = scalar_lea.vmem %s8, %s350
        $region52: #{tpu_custom_call.1} parent=35 // pred_fallthru
          _
      $region36: #{tpu_custom_call.1} parent=5 // pred_fallthru
        _
      %p352 = scmp.le.s32.totalorder 1, %s20
      %p353 = scmp.lt.s32.totalorder %s20, 3
      %p354 = pnand %p352, %p353
      %p355 = pneg %p354
      // Predicated region
      $region53: #{tpu_custom_call.1} parent=5 // pred_check
        _
      $region54: #{tpu_custom_call.1} parent=5 // pred_check_branch
        %357 = sbr.rel (%p354) target = $region56
      $region55: #{tpu_custom_call.1} parent=5 // pred_region
        %s358 = ssub.s32 %s20, 1
        // Predicated region
        $region57: #{tpu_custom_call.1} parent=55 // pred_check
          %p359 = pneg %p41
        $region58: #{tpu_custom_call.1} parent=55 // pred_check_branch
          %361 = sbr.rel (%p359) target = $region60
        $region59: #{tpu_custom_call.1} parent=55 // pred_region
          %362 = dma.done [#allocation3], 1024
        $region60: #{tpu_custom_call.1} parent=55 // pred_fallthru
          _
        // Predicated region
        $region61: #{tpu_custom_call.1} parent=55 // pred_check
          %p363 = pneg %p104
        $region62: #{tpu_custom_call.1} parent=55 // pred_check_branch
          %365 = sbr.rel (%p363) target = $region64
        $region63: #{tpu_custom_call.1} parent=55 // pred_region
          %366 = dma.done [#allocation6], 2048
        $region64: #{tpu_custom_call.1} parent=55 // pred_fallthru
          _
        %s367 = sand.u32 %s25, 1
        %s368 = scalar_lea.sflag [#allocation3], %s367
        %s369 = sand.u32 %s138, 1
        %s370 = smul.addr %s369, 32
        %s371 = scalar_lea.vmem [#allocation7], %s370
        // Predicated region
        $region65: #{tpu_custom_call.1} parent=55 // pred_check
          %p372 = pneg %p151
        $region66: #{tpu_custom_call.1} parent=55 // pred_check_branch
          %374 = sbr.rel (%p372) target = $region68
        $region67: #{tpu_custom_call.1} parent=55 // pred_region
          %375 = dma.done %s368, 512
        $region68: #{tpu_custom_call.1} parent=55 // pred_fallthru
          _
        %p376 = pneg %p41
        %p377 = pneg %p38
        %p378 = pneg %p62
        %p379 = pneg %p59
        %p380 = pneg %p83
        %p381 = pneg %p80
        %p382 = pneg %p104
        %p383 = pneg %p101
        %p384 = pneg %p125
        %p385 = pneg %p122
        %s386 = sand.u32 %s25, 1
        %s387 = scalar_lea.sflag [#allocation3], %s386
        %s388 = sand.u32 %s138, 1
        %s389 = smul.addr %s388, 32
        %s390 = scalar_lea.vmem [#allocation7], %s389
        %p391 = pneg %p151
        %p392 = pneg %p148
        %p393 = scmp.lt.s32.totalorder %s25, 1
        %s394 = scalar_select %p393, %s25, 1
        %s395 = smul.addr %s394, 8
        %s396 = smul.addr %s395, 8
        %s397 = scalar_lea.vmem %s6, %s396
        %p398 = pneg %p177
        %p399 = pneg %p174
        %p400 = scmp.lt.s32.totalorder %s25, 1
        %s401 = scalar_select %p400, %s25, 1
        %s402 = smul.addr %s401, 4
        %s403 = smul.addr %s402, 8
        %s404 = scalar_lea.vmem %s7, %s403
        %p405 = pneg %p203
        %p406 = pneg %p200
        %p407 = scmp.lt.s32.totalorder %s25, 1
        %s408 = scalar_select %p407, %s25, 1
        %s409 = scalar_lea.vmem %s8, %s408
        %p410 = pneg %p229
        %p411 = pneg %p226
        %p412 = pneg %p255
        %p413 = pneg %p252
        %s414 = sand.u32 %s242, 1
        %s415 = scalar_lea.sflag [#allocation4], %s414
        %s416 = sand.u32 %s242, 1
        %s417 = smul.addr %s416, 32
        %s418 = scalar_lea.vmem [#allocation8], %s417
        %p419 = scmp.lt.s32.totalorder %s25, 1
        %s420 = scalar_select %p419, %s25, 1
        %s421 = smul.addr %s420, 8
        %s422 = smul.addr %s421, 8
        %s423 = scalar_lea.vmem %s6, %s422
        %p424 = scmp.lt.s32.totalorder %s25, 1
        %s425 = scalar_select %p424, %s25, 1
        %s426 = smul.addr %s425, 4
        %s427 = smul.addr %s426, 8
        %s428 = scalar_lea.vmem %s7, %s427
        %p429 = scmp.lt.s32.totalorder %s25, 1
        %s430 = scalar_select %p429, %s25, 1
        %s431 = scalar_lea.vmem %s8, %s430
        %v432 = vld [vmem:[%s371] sm:$0xff]
        %v433 = vld [vmem:[%s371 + $0x8] sm:$0xff]
        %v434 = vld [vmem:[%s371 + $0x10] sm:$0xff]
        %v435 = vld [vmem:[%s371 + $0x18] sm:$0xff]
        %v436 = vld [vmem:[#allocation5] sm:$0xff]
        %v437 = vld [vmem:[#allocation5 + $0x8] sm:$0xff]
        %v438 = vld [vmem:[#allocation5 + $0x10] sm:$0xff]
        %v439 = vld [vmem:[#allocation5 + $0x18] sm:$0xff]
        %v440 = vld [vmem:[#allocation5 + $0x20] sm:$0xff]
        %v441 = vld [vmem:[#allocation5 + $0x28] sm:$0xff]
        %v442 = vld [vmem:[#allocation5 + $0x30] sm:$0xff]
        %v443 = vld [vmem:[#allocation5 + $0x38] sm:$0xff]
        %v444 = vld [vmem:[#allocation5 + $0x40] sm:$0xff]
        %v445 = vld [vmem:[#allocation5 + $0x48] sm:$0xff]
        %v446 = vld [vmem:[#allocation5 + $0x50] sm:$0xff]
        %v447 = vld [vmem:[#allocation5 + $0x58] sm:$0xff]
        %v448 = vld [vmem:[#allocation5 + $0x60] sm:$0xff]
        %v449 = vld [vmem:[#allocation5 + $0x68] sm:$0xff]
        %v450 = vld [vmem:[#allocation5 + $0x70] sm:$0xff]
        %v451 = vld [vmem:[#allocation5 + $0x78] sm:$0xff]
        %v452 = vld [vmem:[%s1] sm:$0x3]
        %v454 = vlaneseq
        %v455 = vshrl.u32 %v454, 7
        %v456 = vsub.s32 0, %v455
        %v457 = vrot.slane %v452, %v456
        %v458 = vlaneseq
        %v459 = vshrl.u32 %v458, 7
        %v460 = vsub.s32 1, %v459
        %v461 = vrot.slane %v452, %v460
        %vm464 = vcmask 523264
        %v466 = vsel %vm464, %v432, 0
        %v469 = vsel %vm464, %v433, 0
        %v472 = vsel %vm464, %v434, 0
        %v475 = vsel %vm464, %v435, 0
        %477 = vmatprep.subr.mxu0 0.0
        %478 = vmatpush1.msra.mxu0 0.0
        %479 = vmatprep.subr.mxu0 0.0
        %480 = vmatpush1.msra.mxu0 0.0
        %481 = vmatprep.subr.mxu0 0.0
        %482 = vmatpush1.msra.mxu0 0.0
        %483 = vmatprep.subr.mxu0 0.0
        %484 = vmatpush1.msra.mxu0 0.0
        %485 = vmatprep.subr.mxu0 0.0
        %486 = vmatpush1.msra.mxu0 0.0
        %487 = vmatprep.subr.mxu0 0.0
        %488 = vmatpush1.msra.mxu0 0.0
        %489 = vmatprep.subr.mxu0 0.0
        %490 = vmatpush1.msra.mxu0 0.0
        %491 = vmatprep.subr.mxu0 0.0
        %492 = vmatpush1.msra.mxu0 0.0
        %493 = vmatprep.subr.mxu0 %v451
        %494 = vmatpush1.msra.mxu0 %v450
        %495 = vmatprep.subr.mxu0 %v449
        %496 = vmatpush1.msra.mxu0 %v448
        %497 = vmatprep.subr.mxu0 %v447
        %498 = vmatpush1.msra.mxu0 %v446
        %499 = vmatprep.subr.mxu0 %v445
        %500 = vmatpush1.msra.mxu0 %v444
        %501 = vmatprep.subr.mxu0 %v443
        %502 = vmatpush1.msra.mxu0 %v442
        %503 = vmatprep.subr.mxu0 %v441
        %504 = vmatpush1.msra.mxu0 %v440
        %505 = vmatprep.subr.mxu0 %v439
        %506 = vmatpush1.msra.mxu0 %v438
        %507 = vmatprep.subr.mxu0 %v437
        %508 = vmatpush1.msra.mxu0 %v436
        %509 = vmatprep.subr.mxu0 0.0
        %510 = vmatpush2.msra.mxu0 0.0
        %511 = vmatprep.subr.mxu0 0.0
        %512 = vmatpush2.msra.mxu0 0.0
        %513 = vmatprep.subr.mxu0 0.0
        %514 = vmatpush2.msra.mxu0 0.0
        %515 = vmatprep.subr.mxu0 0.0
        %516 = vmatpush2.msra.mxu0 0.0
        %517 = vmatprep.subr.mxu0 0.0
        %518 = vmatpush2.msra.mxu0 0.0
        %519 = vmatprep.subr.mxu0 0.0
        %520 = vmatpush2.msra.mxu0 0.0
        %521 = vmatprep.subr.mxu0 0.0
        %522 = vmatpush2.msra.mxu0 0.0
        %523 = vmatprep.subr.mxu0 0.0
        %524 = vmatpush2.msra.mxu0 0.0
        %525 = vmatprep.subr.mxu0 0.0
        %526 = vmatpush2.msra.mxu0 0.0
        %527 = vmatprep.subr.mxu0 0.0
        %528 = vmatpush2.msra.mxu0 0.0
        %529 = vmatprep.subr.mxu0 0.0
        %530 = vmatpush2.msra.mxu0 0.0
        %531 = vmatprep.subr.mxu0 0.0
        %532 = vmatpush2.msra.mxu0 0.0
        %533 = vmatprep.subr.mxu0 0.0
        %534 = vmatpush2.msra.mxu0 0.0
        %535 = vmatprep.subr.mxu0 0.0
        %536 = vmatpush2.msra.mxu0 0.0
        %537 = vmatprep.subr.mxu0 0.0
        %538 = vmatpush2.msra.mxu0 0.0
        %539 = vmatprep.subr.mxu0 0.0
        %540 = vmatpush2.msra.mxu0 0.0
        %541 = vmatprep.mubr.f32.mxu0 0.0
        %542 = vmatmul.mubr.f32.gmra.mxu0 %v466
        %v543 = vpop.f32.mrf.mxu0
        %v544 = vadd.f32 %v457, %v543
        %v545 = vpop.f32.mrf.mxu0
        %v546 = vadd.f32 %v461, %v545
        %547 = vmatprep.mubr.f32.mxu0 0.0
        %548 = vmatmul.mubr.f32.gmra.mxu0 %v469
        %v549 = vpop.f32.mrf.mxu0
        %v550 = vadd.f32 %v457, %v549
        %v551 = vpop.f32.mrf.mxu0
        %v552 = vadd.f32 %v461, %v551
        %553 = vmatprep.mubr.f32.mxu0 0.0
        %554 = vmatmul.mubr.f32.gmra.mxu0 %v472
        %v555 = vpop.f32.mrf.mxu0
        %v556 = vadd.f32 %v457, %v555
        %v557 = vpop.f32.mrf.mxu0
        %v558 = vadd.f32 %v461, %v557
        %559 = vmatprep.mubr.f32.mxu0 0.0
        %560 = vmatmul.mubr.f32.gmra.mxu0 %v475
        %v561 = vpop.f32.mrf.mxu0
        %v562 = vadd.f32 %v457, %v561
        %v563 = vpop.f32.mrf.mxu0
        %v564 = vadd.f32 %v461, %v563
        %565 = vdwg.mxu0
        %v566 = vld [vmem:[#allocation2] sm:$0xff]
        %v567 = vld [vmem:[#allocation2 + $0x8] sm:$0xff]
        %v568 = vld [vmem:[#allocation2 + $0x10] sm:$0xff]
        %v569 = vld [vmem:[#allocation2 + $0x18] sm:$0xff]
        %v570 = vld [vmem:[#allocation2 + $0x20] sm:$0xff]
        %v571 = vld [vmem:[#allocation2 + $0x28] sm:$0xff]
        %v572 = vld [vmem:[#allocation2 + $0x30] sm:$0xff]
        %v573 = vld [vmem:[#allocation2 + $0x38] sm:$0xff]
        %v574 = vld [vmem:[%s2] sm:$0x1]
        %v576 = vlaneseq
        %v577 = vshrl.u32 %v576, 7
        %v578 = vsub.s32 0, %v577
        %v579 = vrot.slane %v574, %v578
        %581 = vmatprep.subr.mxu0 0.0
        %582 = vmatpush1.msra.mxu0 0.0
        %583 = vmatprep.subr.mxu0 0.0
        %584 = vmatpush1.msra.mxu0 0.0
        %585 = vmatprep.subr.mxu0 0.0
        %586 = vmatpush1.msra.mxu0 0.0
        %587 = vmatprep.subr.mxu0 0.0
        %588 = vmatpush1.msra.mxu0 0.0
        %589 = vmatprep.subr.mxu0 0.0
        %590 = vmatpush1.msra.mxu0 0.0
        %591 = vmatprep.subr.mxu0 0.0
        %592 = vmatpush1.msra.mxu0 0.0
        %593 = vmatprep.subr.mxu0 0.0
        %594 = vmatpush1.msra.mxu0 0.0
        %595 = vmatprep.subr.mxu0 0.0
        %596 = vmatpush1.msra.mxu0 0.0
        %597 = vmatprep.subr.mxu0 0.0
        %598 = vmatpush1.msra.mxu0 %v573
        %599 = vmatprep.subr.mxu0 0.0
        %600 = vmatpush1.msra.mxu0 %v572
        %601 = vmatprep.subr.mxu0 0.0
        %602 = vmatpush1.msra.mxu0 %v571
        %603 = vmatprep.subr.mxu0 0.0
        %604 = vmatpush1.msra.mxu0 %v570
        %605 = vmatprep.subr.mxu0 0.0
        %606 = vmatpush1.msra.mxu0 %v569
        %607 = vmatprep.subr.mxu0 0.0
        %608 = vmatpush1.msra.mxu0 %v568
        %609 = vmatprep.subr.mxu0 0.0
        %610 = vmatpush1.msra.mxu0 %v567
        %611 = vmatprep.subr.mxu0 0.0
        %612 = vmatpush1.msra.mxu0 %v566
        %613 = vmatprep.subr.mxu0 0.0
        %614 = vmatpush2.msra.mxu0 0.0
        %615 = vmatprep.subr.mxu0 0.0
        %616 = vmatpush2.msra.mxu0 0.0
        %617 = vmatprep.subr.mxu0 0.0
        %618 = vmatpush2.msra.mxu0 0.0
        %619 = vmatprep.subr.mxu0 0.0
        %620 = vmatpush2.msra.mxu0 0.0
        %621 = vmatprep.subr.mxu0 0.0
        %622 = vmatpush2.msra.mxu0 0.0
        %623 = vmatprep.subr.mxu0 0.0
        %624 = vmatpush2.msra.mxu0 0.0
        %625 = vmatprep.subr.mxu0 0.0
        %626 = vmatpush2.msra.mxu0 0.0
        %627 = vmatprep.subr.mxu0 0.0
        %628 = vmatpush2.msra.mxu0 0.0
        %629 = vmatprep.subr.mxu0 0.0
        %630 = vmatpush2.msra.mxu0 0.0
        %631 = vmatprep.subr.mxu0 0.0
        %632 = vmatpush2.msra.mxu0 0.0
        %633 = vmatprep.subr.mxu0 0.0
        %634 = vmatpush2.msra.mxu0 0.0
        %635 = vmatprep.subr.mxu0 0.0
        %636 = vmatpush2.msra.mxu0 0.0
        %637 = vmatprep.subr.mxu0 0.0
        %638 = vmatpush2.msra.mxu0 0.0
        %639 = vmatprep.subr.mxu0 0.0
        %640 = vmatpush2.msra.mxu0 0.0
        %641 = vmatprep.subr.mxu0 0.0
        %642 = vmatpush2.msra.mxu0 0.0
        %643 = vmatprep.subr.mxu0 0.0
        %644 = vmatpush2.msra.mxu0 0.0
        %645 = vmatprep.mubr.f32.mxu0 0.0
        %646 = vmatmul.mubr.f32.gmra.mxu0 %v466
        %v647 = vpop.f32.mrf.mxu0
        %v648 = vadd.f32 %v579, %v647
        %v649 = vpop.f32.mrf.mxu0
        %650 = vmatprep.mubr.f32.mxu0 0.0
        %651 = vmatmul.mubr.f32.gmra.mxu0 %v469
        %v652 = vpop.f32.mrf.mxu0
        %v653 = vadd.f32 %v579, %v652
        %v654 = vpop.f32.mrf.mxu0
        %655 = vmatprep.mubr.f32.mxu0 0.0
        %656 = vmatmul.mubr.f32.gmra.mxu0 %v472
        %v657 = vpop.f32.mrf.mxu0
        %v658 = vadd.f32 %v579, %v657
        %v659 = vpop.f32.mrf.mxu0
        %660 = vmatprep.mubr.f32.mxu0 0.0
        %661 = vmatmul.mubr.f32.gmra.mxu0 %v475
        %v662 = vpop.f32.mrf.mxu0
        %v663 = vadd.f32 %v579, %v662
        %v664 = vpop.f32.mrf.mxu0
        %665 = vdwg.mxu0
        %v666 = vld [vmem:[%s4] sm:$0xff]
        %v667 = vld [vmem:[%s4 + $0x8] sm:$0xff]
        %v668 = vld [vmem:[%s4 + $0x10] sm:$0xff]
        %v669 = vld [vmem:[%s4 + $0x18] sm:$0xff]
        %v670 = vld [vmem:[%s4 + $0x20] sm:$0xff]
        %v671 = vld [vmem:[%s4 + $0x28] sm:$0xff]
        %v672 = vld [vmem:[%s4 + $0x30] sm:$0xff]
        %v673 = vld [vmem:[%s4 + $0x38] sm:$0xff]
        %v674 = vld [vmem:[%s4 + $0x40] sm:$0xff]
        %v675 = vld [vmem:[%s4 + $0x48] sm:$0xff]
        %v676 = vld [vmem:[%s4 + $0x50] sm:$0xff]
        %v677 = vld [vmem:[%s4 + $0x58] sm:$0xff]
        %v678 = vld [vmem:[%s4 + $0x60] sm:$0xff]
        %v679 = vld [vmem:[%s4 + $0x68] sm:$0xff]
        %v680 = vld [vmem:[%s4 + $0x70] sm:$0xff]
        %v681 = vld [vmem:[%s4 + $0x78] sm:$0xff]
        %v682 = vld [vmem:[%s4 + $0x80] sm:$0xff]
        %v683 = vld [vmem:[%s4 + $0x88] sm:$0xff]
        %v684 = vld [vmem:[%s4 + $0x90] sm:$0xff]
        %v685 = vld [vmem:[%s4 + $0x98] sm:$0xff]
        %v686 = vld [vmem:[%s4 + $0xa0] sm:$0xff]
        %v687 = vld [vmem:[%s4 + $0xa8] sm:$0xff]
        %v688 = vld [vmem:[%s4 + $0xb0] sm:$0xff]
        %v689 = vld [vmem:[%s4 + $0xb8] sm:$0xff]
        %v690 = vld [vmem:[%s4 + $0xc0] sm:$0xff]
        %v691 = vld [vmem:[%s4 + $0xc8] sm:$0xff]
        %v692 = vld [vmem:[%s4 + $0xd0] sm:$0xff]
        %v693 = vld [vmem:[%s4 + $0xd8] sm:$0xff]
        %v694 = vld [vmem:[%s4 + $0xe0] sm:$0xff]
        %v695 = vld [vmem:[%s4 + $0xe8] sm:$0xff]
        %v696 = vld [vmem:[%s4 + $0xf0] sm:$0xff]
        %v697 = vld [vmem:[%s4 + $0xf8] sm:$0xff]
        %v698 = vld [vmem:[%s423] sm:$0xff]
        %v699 = vld [vmem:[%s423 + $0x8] sm:$0xff]
        %v700 = vld [vmem:[%s423 + $0x10] sm:$0xff]
        %v701 = vld [vmem:[%s423 + $0x18] sm:$0xff]
        %v702 = vld [vmem:[%s423 + $0x20] sm:$0xff]
        %v703 = vld [vmem:[%s423 + $0x28] sm:$0xff]
        %v704 = vld [vmem:[%s423 + $0x30] sm:$0xff]
        %v705 = vld [vmem:[%s423 + $0x38] sm:$0xff]
        %714 = vrot.lane.b32.xlu0 %v698, 32
        %v715 = vpop.permute.xlu0 %714
        %716 = vrot.lane.b32.xlu0 %v699, 32
        %v717 = vpop.permute.xlu0 %716
        %718 = vrot.lane.b32.xlu0 %v700, 32
        %v719 = vpop.permute.xlu0 %718
        %720 = vrot.lane.b32.xlu0 %v701, 32
        %v721 = vpop.permute.xlu0 %720
        %722 = vrot.lane.b32.xlu0 %v702, 32
        %v723 = vpop.permute.xlu0 %722
        %724 = vrot.lane.b32.xlu0 %v703, 32
        %v725 = vpop.permute.xlu0 %724
        %726 = vrot.lane.b32.xlu0 %v704, 32
        %v727 = vpop.permute.xlu0 %726
        %728 = vrot.lane.b32.xlu0 %v705, 32
        %v729 = vpop.permute.xlu0 %728
        %738 = vrot.lane.b32.xlu0 %v698, 64
        %v739 = vpop.permute.xlu0 %738
        %740 = vrot.lane.b32.xlu0 %v699, 64
        %v741 = vpop.permute.xlu0 %740
        %742 = vrot.lane.b32.xlu0 %v700, 64
        %v743 = vpop.permute.xlu0 %742
        %744 = vrot.lane.b32.xlu0 %v701, 64
        %v745 = vpop.permute.xlu0 %744
        %746 = vrot.lane.b32.xlu0 %v702, 64
        %v747 = vpop.permute.xlu0 %746
        %748 = vrot.lane.b32.xlu0 %v703, 64
        %v749 = vpop.permute.xlu0 %748
        %750 = vrot.lane.b32.xlu0 %v704, 64
        %v751 = vpop.permute.xlu0 %750
        %752 = vrot.lane.b32.xlu0 %v705, 64
        %v753 = vpop.permute.xlu0 %752
        %762 = vrot.lane.b32.xlu0 %v698, 96
        %v763 = vpop.permute.xlu0 %762
        %764 = vrot.lane.b32.xlu0 %v699, 96
        %v765 = vpop.permute.xlu0 %764
        %766 = vrot.lane.b32.xlu0 %v700, 96
        %v767 = vpop.permute.xlu0 %766
        %768 = vrot.lane.b32.xlu0 %v701, 96
        %v769 = vpop.permute.xlu0 %768
        %770 = vrot.lane.b32.xlu0 %v702, 96
        %v771 = vpop.permute.xlu0 %770
        %772 = vrot.lane.b32.xlu0 %v703, 96
        %v773 = vpop.permute.xlu0 %772
        %774 = vrot.lane.b32.xlu0 %v704, 96
        %v775 = vpop.permute.xlu0 %774
        %776 = vrot.lane.b32.xlu0 %v705, 96
        %v777 = vpop.permute.xlu0 %776
        %vm786 = vcmask 261120
        %v787 = vsel %vm786, %v698, %v715
        %v788 = vsel %vm786, %v699, %v717
        %v789 = vsel %vm786, %v700, %v719
        %v790 = vsel %vm786, %v701, %v721
        %v791 = vsel %vm786, %v702, %v723
        %v792 = vsel %vm786, %v703, %v725
        %v793 = vsel %vm786, %v704, %v727
        %v794 = vsel %vm786, %v705, %v729
        %v795 = vsel %vm464, %v787, %v739
        %v796 = vsel %vm464, %v788, %v741
        %v797 = vsel %vm464, %v789, %v743
        %v798 = vsel %vm464, %v790, %v745
        %v799 = vsel %vm464, %v791, %v747
        %v800 = vsel %vm464, %v792, %v749
        %v801 = vsel %vm464, %v793, %v751
        %v802 = vsel %vm464, %v794, %v753
        %vm803 = vcmask 785408
        %v804 = vsel %vm803, %v795, %v763
        %v805 = vsel %vm803, %v796, %v765
        %v806 = vsel %vm803, %v797, %v767
        %v807 = vsel %vm803, %v798, %v769
        %v808 = vsel %vm803, %v799, %v771
        %v809 = vsel %vm803, %v800, %v773
        %v810 = vsel %vm803, %v801, %v775
        %v811 = vsel %vm803, %v802, %v777
        %v812 = vmul.f32 %v804, %v666
        %v813 = vmul.f32 %v805, %v667
        %v814 = vmul.f32 %v806, %v668
        %v815 = vmul.f32 %v807, %v669
        %v816 = vmul.f32 %v808, %v670
        %v817 = vmul.f32 %v809, %v671
        %v818 = vmul.f32 %v810, %v672
        %v819 = vmul.f32 %v811, %v673
        %v820 = vmul.f32 %v804, %v674
        %v821 = vmul.f32 %v805, %v675
        %v822 = vmul.f32 %v806, %v676
        %v823 = vmul.f32 %v807, %v677
        %v824 = vmul.f32 %v808, %v678
        %v825 = vmul.f32 %v809, %v679
        %v826 = vmul.f32 %v810, %v680
        %v827 = vmul.f32 %v811, %v681
        %v828 = vmul.f32 %v804, %v682
        %v829 = vmul.f32 %v805, %v683
        %v830 = vmul.f32 %v806, %v684
        %v831 = vmul.f32 %v807, %v685
        %v832 = vmul.f32 %v808, %v686
        %v833 = vmul.f32 %v809, %v687
        %v834 = vmul.f32 %v810, %v688
        %v835 = vmul.f32 %v811, %v689
        %v836 = vmul.f32 %v804, %v690
        %v837 = vmul.f32 %v805, %v691
        %v838 = vmul.f32 %v806, %v692
        %v839 = vmul.f32 %v807, %v693
        %v840 = vmul.f32 %v808, %v694
        %v841 = vmul.f32 %v809, %v695
        %v842 = vmul.f32 %v810, %v696
        %v843 = vmul.f32 %v811, %v697
        %844 = vmatprep.subr.mxu0 0.0
        %845 = vmatpush1.msra.mxu0 %v827
        %846 = vmatprep.subr.mxu0 0.0
        %847 = vmatpush1.msra.mxu0 %v826
        %848 = vmatprep.subr.mxu0 0.0
        %849 = vmatpush1.msra.mxu0 %v825
        %850 = vmatprep.subr.mxu0 0.0
        %851 = vmatpush1.msra.mxu0 %v824
        %852 = vmatprep.subr.mxu0 0.0
        %853 = vmatpush1.msra.mxu0 %v823
        %854 = vmatprep.subr.mxu0 0.0
        %855 = vmatpush1.msra.mxu0 %v822
        %856 = vmatprep.subr.mxu0 0.0
        %857 = vmatpush1.msra.mxu0 %v821
        %858 = vmatprep.subr.mxu0 0.0
        %859 = vmatpush1.msra.mxu0 %v820
        %860 = vmatprep.subr.mxu0 0.0
        %861 = vmatpush1.msra.mxu0 %v819
        %862 = vmatprep.subr.mxu0 0.0
        %863 = vmatpush1.msra.mxu0 %v818
        %864 = vmatprep.subr.mxu0 0.0
        %865 = vmatpush1.msra.mxu0 %v817
        %866 = vmatprep.subr.mxu0 0.0
        %867 = vmatpush1.msra.mxu0 %v816
        %868 = vmatprep.subr.mxu0 0.0
        %869 = vmatpush1.msra.mxu0 %v815
        %870 = vmatprep.subr.mxu0 0.0
        %871 = vmatpush1.msra.mxu0 %v814
        %872 = vmatprep.subr.mxu0 0.0
        %873 = vmatpush1.msra.mxu0 %v813
        %874 = vmatprep.subr.mxu0 0.0
        %875 = vmatpush1.msra.mxu0 %v812
        %876 = vmatprep.subr.mxu0 0.0
        %877 = vmatpush2.msra.mxu0 %v843
        %878 = vmatprep.subr.mxu0 0.0
        %879 = vmatpush2.msra.mxu0 %v842
        %880 = vmatprep.subr.mxu0 0.0
        %881 = vmatpush2.msra.mxu0 %v841
        %882 = vmatprep.subr.mxu0 0.0
        %883 = vmatpush2.msra.mxu0 %v840
        %884 = vmatprep.subr.mxu0 0.0
        %885 = vmatpush2.msra.mxu0 %v839
        %886 = vmatprep.subr.mxu0 0.0
        %887 = vmatpush2.msra.mxu0 %v838
        %888 = vmatprep.subr.mxu0 0.0
        %889 = vmatpush2.msra.mxu0 %v837
        %890 = vmatprep.subr.mxu0 0.0
        %891 = vmatpush2.msra.mxu0 %v836
        %892 = vmatprep.subr.mxu0 0.0
        %893 = vmatpush2.msra.mxu0 %v835
        %894 = vmatprep.subr.mxu0 0.0
        %895 = vmatpush2.msra.mxu0 %v834
        %896 = vmatprep.subr.mxu0 0.0
        %897 = vmatpush2.msra.mxu0 %v833
        %898 = vmatprep.subr.mxu0 0.0
        %899 = vmatpush2.msra.mxu0 %v832
        %900 = vmatprep.subr.mxu0 0.0
        %901 = vmatpush2.msra.mxu0 %v831
        %902 = vmatprep.subr.mxu0 0.0
        %903 = vmatpush2.msra.mxu0 %v830
        %904 = vmatprep.subr.mxu0 0.0
        %905 = vmatpush2.msra.mxu0 %v829
        %906 = vmatprep.subr.mxu0 0.0
        %907 = vmatpush2.msra.mxu0 %v828
        %908 = vmatprep.mubr.f32.mxu0 %v546
        %909 = vmatmul.mubr.f32.gmra.mxu0 %v544
        %v910 = vpop.f32.mrf.mxu0
        %v911 = vadd.f32 %v648, %v910
        %v912 = vpop.f32.mrf.mxu0
        %913 = vmatprep.mubr.f32.mxu0 %v552
        %914 = vmatmul.mubr.f32.gmra.mxu0 %v550
        %v915 = vpop.f32.mrf.mxu0
        %v916 = vadd.f32 %v653, %v915
        %v917 = vpop.f32.mrf.mxu0
        %918 = vmatprep.mubr.f32.mxu0 %v558
        %919 = vmatmul.mubr.f32.gmra.mxu0 %v556
        %v920 = vpop.f32.mrf.mxu0
        %v921 = vadd.f32 %v658, %v920
        %v922 = vpop.f32.mrf.mxu0
        %923 = vmatprep.mubr.f32.mxu0 %v564
        %924 = vmatmul.mubr.f32.gmra.mxu0 %v562
        %v925 = vpop.f32.mrf.mxu0
        %v926 = vadd.f32 %v663, %v925
        %v927 = vpop.f32.mrf.mxu0
        %928 = vdwg.mxu0
        %v929 = vld [vmem:[%s428] sm:$0xff]
        %v930 = vld [vmem:[%s428 + $0x8] sm:$0xff]
        %v931 = vld [vmem:[%s428 + $0x10] sm:$0xff]
        %v932 = vld [vmem:[%s428 + $0x18] sm:$0xff]
        %934 = vset.pattern.permute.xlu0 0
        %935 = vperm.xlu0 %934, %v929
        %v936 = vpop.permute.xlu0 %935
        %939 = vset.pattern.permute.xlu0 0
        %940 = vperm.xlu0 %939, %v930
        %v941 = vpop.permute.xlu0 %940
        %944 = vset.pattern.permute.xlu0 0
        %945 = vperm.xlu0 %944, %v931
        %v946 = vpop.permute.xlu0 %945
        %949 = vset.pattern.permute.xlu0 0
        %950 = vperm.xlu0 %949, %v932
        %v951 = vpop.permute.xlu0 %950
        %v953 = vmul.f32 %v911, %v936
        %v954 = vmul.f32 %v916, %v941
        %v955 = vmul.f32 %v921, %v946
        %v956 = vmul.f32 %v926, %v951
        %v957 = vld [vmem:[%s431] sm:$0x1]
        %v959 = vlaneseq
        %v960 = vshrl.u32 %v959, 7
        %v961 = vsub.s32 0, %v960
        %v962 = vrot.slane %v957, %v961
        %v964 = vmul.f32 %v953, %v962
        %v965 = vmul.f32 %v954, %v962
        %v966 = vmul.f32 %v955, %v962
        %v967 = vmul.f32 %v956, %v962
        %968 = vst [vmem:[%s418] sm:$0xff] %v964
        %969 = vst [vmem:[%s418 + $0x8] sm:$0xff] %v965
        %970 = vst [vmem:[%s418 + $0x10] sm:$0xff] %v966
        %971 = vst [vmem:[%s418 + $0x18] sm:$0xff] %v967
        %s972 = sand.u32 %s242, 1
        %s973 = scalar_lea.sflag [#allocation4], %s972
        %s974 = sand.u32 %s242, 1
        %s975 = smul.addr %s974, 32
        %s976 = scalar_lea.vmem [#allocation8], %s975
        // Predicated region
        $region69: #{tpu_custom_call.1} parent=55 // pred_check
          %p977 = pneg %p252
        $region70: #{tpu_custom_call.1} parent=55 // pred_check_branch
          %979 = sbr.rel (%p977) target = $region72
        $region71: #{tpu_custom_call.1} parent=55 // pred_region
          %s981 = ssub.s32 512, 512
          %982 = vsyncadd %s973, %s981
          %s983 = smul.addr %s25, 4
          %s984 = smul.addr %s983, 128
          %s985 = scalar_lea.hbm %s9, %s984
          %s986 = sshll.u32 %s976, 4
          %s987 = int_to_ptr.vmem [resolvable:$true] %s986
          %992 = dma.vmem_to_hbm [thread:$0]  %s987, 512, %s985, %s973, 128, 128, 8
        $region72: #{tpu_custom_call.1} parent=55 // pred_fallthru
          _
      $region56: #{tpu_custom_call.1} parent=5 // pred_fallthru
        _
      %p993 = scmp.le.s32.totalorder 2, %s20
      // Predicated region
      $region73: #{tpu_custom_call.1} parent=5 // pred_check
        %p994 = pneg %p993
      $region74: #{tpu_custom_call.1} parent=5 // pred_check_branch
        %996 = sbr.rel (%p994) target = $region76
      $region75: #{tpu_custom_call.1} parent=5 // pred_region
        %s997 = ssub.s32 %s20, 2
        // Predicated region
        $region77: #{tpu_custom_call.1} parent=75 // pred_check
          %p998 = pneg %p258
        $region78: #{tpu_custom_call.1} parent=75 // pred_check_branch
          %1000 = sbr.rel (%p998) target = $region80
        $region79: #{tpu_custom_call.1} parent=75 // pred_region
          %s1001 = sand.u32 %s243, 1
          %s1002 = scalar_lea.sflag [#allocation4], %s1001
          %s1003 = sand.u32 %s243, 1
          %s1004 = smul.addr %s1003, 32
          %s1005 = scalar_lea.vmem [#allocation8], %s1004
          %1006 = dma.done %s1002, 512
        $region80: #{tpu_custom_call.1} parent=75 // pred_fallthru
          _
      $region76: #{tpu_custom_call.1} parent=5 // pred_fallthru
        _
    $region6: #{tpu_custom_call.1} parent=1 // loop_footer
      %s24 = sadd.s32 1, %s20
    $region7: #{tpu_custom_call.1} parent=1 // loop_footer_branch
      %19 = sbr.rel target = $region3
    $region8: #{tpu_custom_call.1} parent=1 // loop_exit
      _
    %1007 = vsyncpa [#allocation3], 1
    %s1008 = scalar_lea.sflag [#allocation3], 1
    %1009 = vsyncpa %s1008, 1
    %1010 = vsyncpa [#allocation6], 1
    %1011 = vsyncpa [#allocation4], 1
    %s1012 = scalar_lea.sflag [#allocation4], 1
    %1013 = vsyncpa %s1012, 1

</llo_original>
